<compile_context>
chip_gen: v7x
topology: tpu7x:2x2x1
jax: 0.10.0
libtpu: 0.0.40
codegen_flags: <defaults>
</compile_context>

<pallas_src>
import jax
import jax.numpy as jnp
from jax.experimental import pallas as pl
from jax.experimental.pallas import tpu as pltpu

ALAPHA_2 = 0.25
C_IN = 128
C_OUT = int(128 * ALAPHA_2)  # 32


def _round_up(x, m):
    return ((x + m - 1) // m) * m


def conv1x1_kernel(x_ref, w_ref, b_ref, o_ref):
    # x_ref: (1, Cin, t_hw)   w_ref: (Cout, Cin)   b_ref: (Cout, 1)
    # o_ref: (1, Cout, t_hw)
    acc = jnp.dot(w_ref[...], x_ref[0], preferred_element_type=jnp.float32)
    o_ref[0] = (acc + b_ref[...]).astype(o_ref.dtype)


def distiller_2_forward(x_nchw, weight, bias, *, max_t_hw=2048):
    """1x1 conv forward.

    x_nchw: (N, 128, H, W), weight: (32, 128, 1, 1), bias: (32,).
    Returns (N, 32, H, W) matching PyTorch Conv2d(128, 32, 1) semantics.
    """
    N, C, H, W = x_nchw.shape
    assert C == C_IN
    HW = H * W

    x = x_nchw.reshape(N, C_IN, HW)          # NCHW-native, no transpose
    w = weight.reshape(C_OUT, C_IN)          # (32, 128), weight-stationary
    b = bias.reshape(C_OUT, 1)               # broadcasts over the lane axis

    # Lane-dense tile along HW: multiple of 128, capped for VMEM sanity.
    t_hw = min(_round_up(HW, 128), max_t_hw)
    hw_pad = _round_up(HW, t_hw)
    if hw_pad != HW:
        x = jnp.pad(x, ((0, 0), (0, 0), (0, hw_pad - HW)))

    grid = (N, hw_pad // t_hw)

    out = pl.pallas_call(
        conv1x1_kernel,
        out_shape=jax.ShapeDtypeStruct((N, C_OUT, hw_pad), x.dtype),
        grid_spec=pltpu.PrefetchScalarGridSpec(
            num_scalar_prefetch=0,
            grid=grid,
            in_specs=[
                pl.BlockSpec((1, C_IN, t_hw), lambda n, j: (n, 0, j)),
                pl.BlockSpec((C_OUT, C_IN), lambda n, j: (0, 0)),
                pl.BlockSpec((C_OUT, 1), lambda n, j: (0, 0)),
            ],
            out_specs=pl.BlockSpec((1, C_OUT, t_hw), lambda n, j: (n, 0, j)),
        ),
        compiler_params=pltpu.CompilerParams(
            dimension_semantics=("parallel", "parallel")),
    )(x, w, b)

    if hw_pad != HW:
        out = out[:, :, :HW]
    return out.reshape(N, C_OUT, H, W)


def init_params(key):
    """Deterministic synthetic Conv2d(128, 32, 1) parameters (PyTorch fan-in scale)."""
    kw, kb = jax.random.split(key)
    fan_in = C_IN * 1 * 1
    bound = 1.0 / (fan_in ** 0.5)
    weight = jax.random.uniform(kw, (C_OUT, C_IN, 1, 1), jnp.float32, -bound, bound)
    bias = jax.random.uniform(kb, (C_OUT,), jnp.float32, -bound, bound)
    return weight, bias


if __name__ == "__main__":
    key = jax.random.PRNGKey(0)
    kx, kp = jax.random.split(key)

    # Small shapes consistent with the module: N=2, C=128 (fixed by the conv), H=W=8.
    x = jax.random.normal(kx, (2, C_IN, 8, 8), jnp.float32)
    weight, bias = init_params(kp)

    y = distiller_2_forward(x, weight, bias)
    y = jax.block_until_ready(y)

    # Sanity check against a plain-JAX reference of the 1x1 conv.
    ref = jnp.einsum("nchw,oc->nohw", x, weight.reshape(C_OUT, C_IN)) \
        + bias[None, :, None, None]
    assert y.shape == (2, C_OUT, 8, 8)
    assert jnp.allclose(y, ref, atol=1e-4, rtol=1e-4)

    print("KERNEL_OK")
</pallas_src>

<mosaic_0001>
module attributes {stable_mosaic.version = 11 : i64} {
  func.func @conv1x1_kernel(%arg0: i32, %arg1: i32, %arg2: memref<1x128x128xf32, #tpu.memory_space<vmem>>, %arg3: memref<32x128xf32, #tpu.memory_space<vmem>>, %arg4: memref<32x1xf32, #tpu.memory_space<vmem>>, %arg5: memref<1x32x128xf32, #tpu.memory_space<vmem>>) attributes {dimension_semantics = [#tpu.dimension_semantics<parallel>, #tpu.dimension_semantics<parallel>], iteration_bounds = array<i64: 2, 1>, scalar_prefetch = 0 : i64, scratch_operands = 0 : i64, tpu.core_type = #tpu.core_type<tc>, window_params = [{transform_indices = @transform_0, window_bounds = array<i64: 1, 128, 128>}, {pipeline_mode = #tpu.pipeline_mode<synchronous>, transform_indices = @transform_1, window_bounds = array<i64: 32, 128>}, {pipeline_mode = #tpu.pipeline_mode<synchronous>, transform_indices = @transform_2, window_bounds = array<i64: 32, 1>}, {transform_indices = @transform_3, window_bounds = array<i64: 1, 32, 128>}]} {
    %c0 = arith.constant 0 : index
    %c0_0 = arith.constant 0 : index
    %0 = vector.load %arg3[%c0, %c0_0] : memref<32x128xf32, #tpu.memory_space<vmem>>, vector<32x128xf32>
    %c0_1 = arith.constant 0 : index
    %c0_2 = arith.constant 0 : index
    %c0_3 = arith.constant 0 : index
    %1 = vector.load %arg2[%c0_1, %c0_2, %c0_3] : memref<1x128x128xf32, #tpu.memory_space<vmem>>, vector<1x128x128xf32>
    %2 = vector.shape_cast %1 : vector<1x128x128xf32> to vector<128x128xf32>
    %cst = arith.constant dense<0.000000e+00> : vector<32x128xf32>
    %3 = tpu.matmul %0, %2, %cst {dimension_numbers = #tpu.dot_dimension_numbers<[1], [0], [0], [1], [0, 0, 1, 1], [], []>} : vector<32x128xf32>, vector<128x128xf32>, vector<32x128xf32> -> vector<32x128xf32>
    %c0_4 = arith.constant 0 : index
    %c0_5 = arith.constant 0 : index
    %4 = vector.load %arg4[%c0_4, %c0_5] : memref<32x1xf32, #tpu.memory_space<vmem>>, vector<32x1xf32>
    %5 = vector.broadcast %4 : vector<32x1xf32> to vector<32x128xf32>
    %6 = arith.addf %3, %5 : vector<32x128xf32>
    %c0_6 = arith.constant 0 : index
    %c0_7 = arith.constant 0 : index
    %c0_8 = arith.constant 0 : index
    %7 = vector.load %arg5[%c0_6, %c0_7, %c0_8] : memref<1x32x128xf32, #tpu.memory_space<vmem>>, vector<1x32x128xf32>
    %8 = vector.shape_cast %7 : vector<1x32x128xf32> to vector<32x128xf32>
    %9 = vector.shape_cast %6 : vector<32x128xf32> to vector<1x32x128xf32>
    tpu.vector_store %arg5[%c0_6, %c0_7, %c0_8], %9 {strides = array<i32>} : memref<1x32x128xf32, #tpu.memory_space<vmem>>, vector<1x32x128xf32>,
    return
  }
  func.func @transform_0(%arg0: i32, %arg1: i32) -> (i32, i32, i32) {
    %c0_i32 = arith.constant 0 : i32
    %c0_i32_0 = arith.constant 0 : i32
    return %arg0, %c0_i32, %arg1 : i32, i32, i32
  }
  func.func @transform_1(%arg0: i32, %arg1: i32) -> (i32, i32) {
    %c0_i32 = arith.constant 0 : i32
    %c0_i32_0 = arith.constant 0 : i32
    %c0_i32_1 = arith.constant 0 : i32
    return %c0_i32, %c0_i32_0 : i32, i32
  }
  func.func @transform_2(%arg0: i32, %arg1: i32) -> (i32, i32) {
    %c0_i32 = arith.constant 0 : i32
    %c0_i32_0 = arith.constant 0 : i32
    %c0_i32_1 = arith.constant 0 : i32
    return %c0_i32, %c0_i32_0 : i32, i32
  }
  func.func @transform_3(%arg0: i32, %arg1: i32) -> (i32, i32, i32) {
    %c0_i32 = arith.constant 0 : i32
    %c0_i32_0 = arith.constant 0 : i32
    return %arg0, %c0_i32, %arg1 : i32, i32, i32
  }
}

</mosaic_0001>

<llo_original>
// kernel: tpu_custom_call.1
$region0: #{tpu_custom_call.1}
  #allocation0 [shape = 'u32[]', space=smem, size = 0x4, offset = 0x4, fixed_abs, tag = 'smem constant byte address 0x4 - core index']
  #allocation1 [shape = 'u32[144,128]{1,0:T(1,128)}', space=vmem, size = 0x12000, scoped, tag = 'internal scratch']
  %s0 = inlined_call_operand.hbm [shape: f32[2,128,128], index: 0, kind: input, shape index: {}]
  %s1 = inlined_call_operand.vmem [shape: f32[32,128], index: 1, kind: input, shape index: {}]
  %s2 = inlined_call_operand.vmem [shape: f32[32,1], index: 2, kind: input, shape index: {}]
  %s3 = inlined_call_operand.hbm [shape: f32[2,32,128], index: 3, kind: output, shape index: {}]
  %s4 = sld [smem:[#allocation0]]
  $region49: #{tpu_custom_call.1} parent=0
    _
  %s6 = ssub.s32 1, %s4
  %s7 = scalar_select 0, %s6, %s4
  $region1: #{tpu_custom_call.1} parent=0
    #allocation2 [shape = 'u8[131072]{0}', space=vmem, size = 0x20000, scoped, tag = 'input window, operand 0']
    #allocation3 [shape = 's32[2]{0}', space=sflag, size = 0x8, scoped, tag = 'scoped memory for tpu_custom_call.1']
    #allocation4 [shape = 's32[2]{0}', space=sflag, size = 0x8, scoped, tag = 'scoped memory for tpu_custom_call.1']
    #allocation5 [shape = 'u8[32768]{0}', space=vmem, size = 0x8000, scoped, tag = 'output window, operand 0']
    %8 = vsyncpa [#allocation3], 0
    %s9 = scalar_lea.sflag [#allocation3], 1
    %10 = vsyncpa %s9, 0
    %11 = vsyncpa [#allocation4], 0
    %s12 = scalar_lea.sflag [#allocation4], 1
    %13 = vsyncpa %s12, 0
    loop: start=0, step=1, limit=4
    $region2: #{tpu_custom_call.1} parent=1 // loop_pre_header
      _
    $region3: #{tpu_custom_call.1} parent=1 // loop_header
      %s15 = sphi 0, %s19
      %p16 = scmp.ge.s32.totalorder %s15, 4
      %s22 = sphi 0, %s34
      %s23 = sphi 0, %s30
      %s24 = sphi 0, %s22
      %s25 = sphi 0, %s23
      %s26 = sphi 0, %s24
      %s27 = sphi 0, %s25
      %s39 = sphi 0, %s41
      %s42 = sphi 0, %s39
      %s43 = sphi 0, %s42
      %s59 = sphi 0, %s43
      %s63 = sphi 0, %s63
      %s65 = sphi 0, %s63
      %s66 = sphi 0, %s65
      %s80 = sphi 0, %s66
      %s84 = sphi 0, %s84
      %s86 = sphi 0, %s84
      %s87 = sphi 0, %s86
      %s101 = sphi 0, %s87
      %s109 = sphi 0, %s111
      %s112 = sphi 0, %s109
      %s113 = sphi 0, %s112
      %s129 = sphi 0, %s113
    $region4: #{tpu_custom_call.1} parent=1 // loop_header_branch
      %18 = sbr.rel (%p16) target = $region8
    $region5: #{tpu_custom_call.1} parent=1 // loop_body
      %s20 = ssub.s32 %s15, 1
      %s21 = ssub.s32 %s15, 2
      %s28 = sadd.s32 1, %s23
      %p29 = scmp.ge.s32.totalorder %s28, 1
      %s30 = scalar_select %p29, 0, %s28
      %s31 = sadd.s32 1, %s22
      %s32 = scalar_select %p29, %s31, %s22
      %p33 = scmp.ge.s32.totalorder %s32, 2
      %s34 = scalar_select %p33, 0, %s32
      %s35 = ssub.s32 %s22, %s34
      %s36 = ssub.s32 %s23, %s30
      %s37 = sor.u32 %s35, %s36
      %p38 = scmp.eq.s32.totalorder %s37, 0
      %s40 = sadd.s32 %s39, 1
      %s41 = scalar_select %p38, %s39, %s40
      %p44 = pneg %p38
      %p45 = scmp.eq.s32.totalorder %s15, 1
      %p46 = por %p44, %p45
      %p47 = scmp.ne.s32.totalorder %s39, %s42
      %p48 = scmp.eq.s32.totalorder %s15, 0
      %p49 = por %p47, %p48
      %p50 = scmp.ne.s32.totalorder %s39, %s42
      %p51 = scmp.eq.s32.totalorder %s20, 1
      %p52 = por %p50, %p51
      %p53 = scmp.ne.s32.totalorder %s42, %s43
      %p54 = scmp.eq.s32.totalorder %s20, 0
      %p55 = por %p53, %p54
      %p56 = scmp.ne.s32.totalorder %s42, %s43
      %p57 = scmp.eq.s32.totalorder %s21, 1
      %p58 = por %p56, %p57
      %p60 = scmp.ne.s32.totalorder %s43, %s59
      %p61 = scmp.eq.s32.totalorder %s21, 0
      %p62 = por %p60, %p61
      %s64 = sadd.s32 %s63, 1
      %p67 = scmp.eq.s32.totalorder %s15, 1
      %p68 = scmp.ne.s32.totalorder %s63, %s65
      %p69 = scmp.eq.s32.totalorder %s15, 0
      %p70 = por %p68, %p69
      %p71 = scmp.ne.s32.totalorder %s63, %s65
      %p72 = scmp.eq.s32.totalorder %s20, 1
      %p73 = por %p71, %p72
      %p74 = scmp.ne.s32.totalorder %s65, %s66
      %p75 = scmp.eq.s32.totalorder %s20, 0
      %p76 = por %p74, %p75
      %p77 = scmp.ne.s32.totalorder %s65, %s66
      %p78 = scmp.eq.s32.totalorder %s21, 1
      %p79 = por %p77, %p78
      %p81 = scmp.ne.s32.totalorder %s66, %s80
      %p82 = scmp.eq.s32.totalorder %s21, 0
      %p83 = por %p81, %p82
      %s85 = sadd.s32 %s84, 1
      %p88 = scmp.eq.s32.totalorder %s15, 1
      %p89 = scmp.ne.s32.totalorder %s84, %s86
      %p90 = scmp.eq.s32.totalorder %s15, 0
      %p91 = por %p89, %p90
      %p92 = scmp.ne.s32.totalorder %s84, %s86
      %p93 = scmp.eq.s32.totalorder %s20, 1
      %p94 = por %p92, %p93
      %p95 = scmp.ne.s32.totalorder %s86, %s87
      %p96 = scmp.eq.s32.totalorder %s20, 0
      %p97 = por %p95, %p96
      %p98 = scmp.ne.s32.totalorder %s86, %s87
      %p99 = scmp.eq.s32.totalorder %s21, 1
      %p100 = por %p98, %p99
      %p102 = scmp.ne.s32.totalorder %s87, %s101
      %p103 = scmp.eq.s32.totalorder %s21, 0
      %p104 = por %p102, %p103
      %s105 = ssub.s32 %s22, %s34
      %s106 = ssub.s32 %s23, %s30
      %s107 = sor.u32 %s105, %s106
      %p108 = scmp.eq.s32.totalorder %s107, 0
      %s110 = sadd.s32 %s109, 1
      %s111 = scalar_select %p108, %s109, %s110
      %p114 = pneg %p108
      %p115 = scmp.eq.s32.totalorder %s15, 1
      %p116 = por %p114, %p115
      %p117 = scmp.ne.s32.totalorder %s109, %s112
      %p118 = scmp.eq.s32.totalorder %s15, 0
      %p119 = por %p117, %p118
      %p120 = scmp.ne.s32.totalorder %s109, %s112
      %p121 = scmp.eq.s32.totalorder %s20, 1
      %p122 = por %p120, %p121
      %p123 = scmp.ne.s32.totalorder %s112, %s113
      %p124 = scmp.eq.s32.totalorder %s20, 0
      %p125 = por %p123, %p124
      %p126 = scmp.ne.s32.totalorder %s112, %s113
      %p127 = scmp.eq.s32.totalorder %s21, 1
      %p128 = por %p126, %p127
      %p130 = scmp.ne.s32.totalorder %s113, %s129
      %p131 = scmp.eq.s32.totalorder %s21, 0
      %p132 = por %p130, %p131
      %p133 = scmp.le.s32.totalorder 1, %s15
      %p134 = scmp.lt.s32.totalorder %s15, 3
      %p135 = pnand %p133, %p134
      %p136 = pneg %p135
      // Predicated region
      $region9: #{tpu_custom_call.1} parent=5 // pred_check
        _
      $region10: #{tpu_custom_call.1} parent=5 // pred_check_branch
        %138 = sbr.rel (%p135) target = $region12
      $region11: #{tpu_custom_call.1} parent=5 // pred_region
        %s139 = ssub.s32 %s15, 1
        // Predicated region
        $region13: #{tpu_custom_call.1} parent=11 // pred_check
          %p140 = pneg %p76
        $region14: #{tpu_custom_call.1} parent=11 // pred_check_branch
          %142 = sbr.rel (%p140) target = $region16
        $region15: #{tpu_custom_call.1} parent=11 // pred_region
          _
        $region16: #{tpu_custom_call.1} parent=11 // pred_fallthru
          _
        // Predicated region
        $region17: #{tpu_custom_call.1} parent=11 // pred_check
          %p143 = pneg %p97
        $region18: #{tpu_custom_call.1} parent=11 // pred_check_branch
          %145 = sbr.rel (%p143) target = $region20
        $region19: #{tpu_custom_call.1} parent=11 // pred_region
          _
        $region20: #{tpu_custom_call.1} parent=11 // pred_fallthru
          _
      $region12: #{tpu_custom_call.1} parent=5 // pred_fallthru
        _
      %p146 = scmp.lt.s32.totalorder %s15, 2
      // Predicated region
      $region21: #{tpu_custom_call.1} parent=5 // pred_check
        %p147 = pneg %p146
      $region22: #{tpu_custom_call.1} parent=5 // pred_check_branch
        %149 = sbr.rel (%p147) target = $region24
      $region23: #{tpu_custom_call.1} parent=5 // pred_region
        // Predicated region
        $region25: #{tpu_custom_call.1} parent=23 // pred_check
          %p150 = pneg %p49
        $region26: #{tpu_custom_call.1} parent=23 // pred_check_branch
          %152 = sbr.rel (%p150) target = $region28
        $region27: #{tpu_custom_call.1} parent=23 // pred_region
          %s153 = sand.u32 %s39, 1
          %s154 = scalar_lea.sflag [#allocation3], %s153
          %s155 = sand.u32 %s39, 1
          %s156 = smul.addr %s155, 128
          %s157 = scalar_lea.vmem [#allocation2], %s156
          %s159 = ssub.s32 2048, 2048
          %160 = vsyncadd %s154, %s159
          %s161 = smul.addr %s22, 16
          %s162 = sadd.s32 %s23, %s161
          %s163 = smul.addr %s162, 128
          %s164 = scalar_lea.hbm %s0, %s163
          %s165 = sshll.u32 %s157, 4
          %s166 = int_to_ptr.vmem [resolvable:$true] %s165
          %171 = dma.hbm_to_vmem [thread:$0]  %s164, 2048, %s166, %s154, 128, 128, 8
        $region28: #{tpu_custom_call.1} parent=23 // pred_fallthru
          _
      $region24: #{tpu_custom_call.1} parent=5 // pred_fallthru
        _
      %p172 = scmp.le.s32.totalorder 1, %s15
      %p173 = scmp.lt.s32.totalorder %s15, 3
      %p174 = pnand %p172, %p173
      %p175 = pneg %p174
      // Predicated region
      $region29: #{tpu_custom_call.1} parent=5 // pred_check
        _
      $region30: #{tpu_custom_call.1} parent=5 // pred_check_branch
        %177 = sbr.rel (%p174) target = $region32
      $region31: #{tpu_custom_call.1} parent=5 // pred_region
        %s178 = ssub.s32 %s15, 1
        %s179 = sand.u32 %s42, 1
        %s180 = scalar_lea.sflag [#allocation3], %s179
        %s181 = sand.u32 %s42, 1
        %s182 = smul.addr %s181, 128
        %s183 = scalar_lea.vmem [#allocation2], %s182
        // Predicated region
        $region33: #{tpu_custom_call.1} parent=31 // pred_check
          %p184 = pneg %p55
        $region34: #{tpu_custom_call.1} parent=31 // pred_check_branch
          %186 = sbr.rel (%p184) target = $region36
        $region35: #{tpu_custom_call.1} parent=31 // pred_region
          %187 = dma.done %s180, 2048
        $region36: #{tpu_custom_call.1} parent=31 // pred_fallthru
          _
        %s188 = sand.u32 %s42, 1
        %s189 = scalar_lea.sflag [#allocation3], %s188
        %s190 = sand.u32 %s42, 1
        %s191 = smul.addr %s190, 128
        %s192 = scalar_lea.vmem [#allocation2], %s191
        %p193 = pneg %p55
        %p194 = pneg %p52
        %p195 = pneg %p76
        %p196 = pneg %p73
        %p197 = pneg %p97
        %p198 = pneg %p94
        %p199 = pneg %p125
        %p200 = pneg %p122
        %s201 = sand.u32 %s112, 1
        %s202 = scalar_lea.sflag [#allocation4], %s201
        %s203 = sand.u32 %s112, 1
        %s204 = smul.addr %s203, 32
        %s205 = scalar_lea.vmem [#allocation5], %s204
        %v206 = vld [vmem:[%s1] sm:$0xff]
        %v207 = vld [vmem:[%s1 + $0x8] sm:$0xff]
        %v208 = vld [vmem:[%s1 + $0x10] sm:$0xff]
        %v209 = vld [vmem:[%s1 + $0x18] sm:$0xff]
        %v210 = vld [vmem:[%s183] sm:$0xff]
        %v211 = vld [vmem:[%s183 + $0x8] sm:$0xff]
        %v212 = vld [vmem:[%s183 + $0x10] sm:$0xff]
        %v213 = vld [vmem:[%s183 + $0x18] sm:$0xff]
        %v214 = vld [vmem:[%s183 + $0x20] sm:$0xff]
        %v215 = vld [vmem:[%s183 + $0x28] sm:$0xff]
        %v216 = vld [vmem:[%s183 + $0x30] sm:$0xff]
        %v217 = vld [vmem:[%s183 + $0x38] sm:$0xff]
        %v218 = vld [vmem:[%s183 + $0x40] sm:$0xff]
        %v219 = vld [vmem:[%s183 + $0x48] sm:$0xff]
        %v220 = vld [vmem:[%s183 + $0x50] sm:$0xff]
        %v221 = vld [vmem:[%s183 + $0x58] sm:$0xff]
        %v222 = vld [vmem:[%s183 + $0x60] sm:$0xff]
        %v223 = vld [vmem:[%s183 + $0x68] sm:$0xff]
        %v224 = vld [vmem:[%s183 + $0x70] sm:$0xff]
        %v225 = vld [vmem:[%s183 + $0x78] sm:$0xff]
        %v226 = vld [vmem:[%s2] sm:$0xff]
        %v227 = vld [vmem:[%s2 + $0x8] sm:$0xff]
        %v228 = vld [vmem:[%s2 + $0x10] sm:$0xff]
        %v229 = vld [vmem:[%s2 + $0x18] sm:$0xff]
        %231 = vset.pattern.permute.xlu0 0
        %232 = vperm.xlu0 %231, %v226
        %v233 = vpop.permute.xlu0 %232
        %236 = vset.pattern.permute.xlu0 0
        %237 = vperm.xlu0 %236, %v227
        %v238 = vpop.permute.xlu0 %237
        %241 = vset.pattern.permute.xlu0 0
        %242 = vperm.xlu0 %241, %v228
        %v243 = vpop.permute.xlu0 %242
        %246 = vset.pattern.permute.xlu0 0
        %247 = vperm.xlu0 %246, %v229
        %v248 = vpop.permute.xlu0 %247
        %250 = vmatprep.subr.mxu0 0.0
        %251 = vmatpush1.msra.mxu0 %v210
        %252 = vmatprep.subr.mxu0 0.0
        %253 = vmatpush1.msra.mxu0 %v211
        %254 = vmatprep.subr.mxu0 0.0
        %255 = vmatpush1.msra.mxu0 %v212
        %256 = vmatprep.subr.mxu0 0.0
        %257 = vmatpush1.msra.mxu0 %v213
        %258 = vmatprep.subr.mxu0 0.0
        %259 = vmatpush1.msra.mxu0 %v214
        %260 = vmatprep.subr.mxu0 0.0
        %261 = vmatpush1.msra.mxu0 %v215
        %262 = vmatprep.subr.mxu0 0.0
        %263 = vmatpush1.msra.mxu0 %v216
        %264 = vmatprep.subr.mxu0 0.0
        %265 = vmatpush1.msra.mxu0 %v217
        %266 = vmatprep.subr.mxu0 0.0
        %267 = vmatpush1.msra.mxu0 %v218
        %268 = vmatprep.subr.mxu0 0.0
        %269 = vmatpush1.msra.mxu0 %v219
        %270 = vmatprep.subr.mxu0 0.0
        %271 = vmatpush1.msra.mxu0 %v220
        %272 = vmatprep.subr.mxu0 0.0
        %273 = vmatpush1.msra.mxu0 %v221
        %274 = vmatprep.subr.mxu0 0.0
        %275 = vmatpush1.msra.mxu0 %v222
        %276 = vmatprep.subr.mxu0 0.0
        %277 = vmatpush1.msra.mxu0 %v223
        %278 = vmatprep.subr.mxu0 0.0
        %279 = vmatpush1.msra.mxu0 %v224
        %280 = vmatprep.subr.mxu0 0.0
        %281 = vmatpush1.msra.mxu0 %v225
        %282 = vmatprep.subr.mxu0 0.0
        %283 = vmatpush1.msra.mxu0 0.0
        %284 = vmatprep.subr.mxu0 0.0
        %285 = vmatpush1.msra.mxu0 0.0
        %286 = vmatprep.subr.mxu0 0.0
        %287 = vmatpush1.msra.mxu0 0.0
        %288 = vmatprep.subr.mxu0 0.0
        %289 = vmatpush1.msra.mxu0 0.0
        %290 = vmatprep.subr.mxu0 0.0
        %291 = vmatpush1.msra.mxu0 0.0
        %292 = vmatprep.subr.mxu0 0.0
        %293 = vmatpush1.msra.mxu0 0.0
        %294 = vmatprep.subr.mxu0 0.0
        %295 = vmatpush1.msra.mxu0 0.0
        %296 = vmatprep.subr.mxu0 0.0
        %297 = vmatpush1.msra.mxu0 0.0
        %298 = vmatprep.subr.mxu0 0.0
        %299 = vmatpush1.msra.mxu0 0.0
        %300 = vmatprep.subr.mxu0 0.0
        %301 = vmatpush1.msra.mxu0 0.0
        %302 = vmatprep.subr.mxu0 0.0
        %303 = vmatpush1.msra.mxu0 0.0
        %304 = vmatprep.subr.mxu0 0.0
        %305 = vmatpush1.msra.mxu0 0.0
        %306 = vmatprep.subr.mxu0 0.0
        %307 = vmatpush1.msra.mxu0 0.0
        %308 = vmatprep.subr.mxu0 0.0
        %309 = vmatpush1.msra.mxu0 0.0
        %310 = vmatprep.subr.mxu0 0.0
        %311 = vmatpush1.msra.mxu0 0.0
        %312 = vmatprep.subr.mxu0 0.0
        %313 = vmatpush1.msra.mxu0 0.0
        %314 = vmatprep.mubr.f32.mxu0 0.0
        %315 = vmatmul.mubr.f32.gmra.mrb[0].mxu0 %v206
        %v316 = vpop.f32.mrb[0].mxu0
        %v317 = vadd.f32 %v233, %v316
        %v318 = vpop.f32.mrb[0].mxu0
        %319 = vmatprep.mubr.f32.mxu0 0.0
        %320 = vmatmul.mubr.f32.gmra.mrb[0].mxu0 %v207
        %v321 = vpop.f32.mrb[0].mxu0
        %v322 = vadd.f32 %v238, %v321
        %v323 = vpop.f32.mrb[0].mxu0
        %324 = vmatprep.mubr.f32.mxu0 0.0
        %325 = vmatmul.mubr.f32.gmra.mrb[0].mxu0 %v208
        %v326 = vpop.f32.mrb[0].mxu0
        %v327 = vadd.f32 %v243, %v326
        %v328 = vpop.f32.mrb[0].mxu0
        %329 = vmatprep.mubr.f32.mxu0 0.0
        %330 = vmatmul.mubr.f32.gmra.mrb[0].mxu0 %v209
        %v331 = vpop.f32.mrb[0].mxu0
        %v332 = vadd.f32 %v248, %v331
        %v333 = vpop.f32.mrb[0].mxu0
        %334 = vdwg.mxu0
        %335 = vst [vmem:[%s205] sm:$0xff] %v317
        %336 = vst [vmem:[%s205 + $0x8] sm:$0xff] %v322
        %337 = vst [vmem:[%s205 + $0x10] sm:$0xff] %v327
        %338 = vst [vmem:[%s205 + $0x18] sm:$0xff] %v332
        %s339 = sand.u32 %s112, 1
        %s340 = scalar_lea.sflag [#allocation4], %s339
        %s341 = sand.u32 %s112, 1
        %s342 = smul.addr %s341, 32
        %s343 = scalar_lea.vmem [#allocation5], %s342
        // Predicated region
        $region37: #{tpu_custom_call.1} parent=31 // pred_check
          %p344 = pneg %p122
        $region38: #{tpu_custom_call.1} parent=31 // pred_check_branch
          %346 = sbr.rel (%p344) target = $region40
        $region39: #{tpu_custom_call.1} parent=31 // pred_region
          %s348 = ssub.s32 512, 512
          %349 = vsyncadd %s340, %s348
          %s350 = smul.addr %s24, 4
          %s351 = sadd.s32 %s25, %s350
          %s352 = smul.addr %s351, 128
          %s353 = scalar_lea.hbm %s3, %s352
          %s354 = sshll.u32 %s343, 4
          %s355 = int_to_ptr.vmem [resolvable:$true] %s354
          %360 = dma.vmem_to_hbm [thread:$0]  %s355, 512, %s353, %s340, 128, 128, 8
        $region40: #{tpu_custom_call.1} parent=31 // pred_fallthru
          _
      $region32: #{tpu_custom_call.1} parent=5 // pred_fallthru
        _
      %p361 = scmp.le.s32.totalorder 2, %s15
      // Predicated region
      $region41: #{tpu_custom_call.1} parent=5 // pred_check
        %p362 = pneg %p361
      $region42: #{tpu_custom_call.1} parent=5 // pred_check_branch
        %364 = sbr.rel (%p362) target = $region44
      $region43: #{tpu_custom_call.1} parent=5 // pred_region
        %s365 = ssub.s32 %s15, 2
        // Predicated region
        $region45: #{tpu_custom_call.1} parent=43 // pred_check
          %p366 = pneg %p128
        $region46: #{tpu_custom_call.1} parent=43 // pred_check_branch
          %368 = sbr.rel (%p366) target = $region48
        $region47: #{tpu_custom_call.1} parent=43 // pred_region
          %s369 = sand.u32 %s113, 1
          %s370 = scalar_lea.sflag [#allocation4], %s369
          %s371 = sand.u32 %s113, 1
          %s372 = smul.addr %s371, 32
          %s373 = scalar_lea.vmem [#allocation5], %s372
          %374 = dma.done %s370, 512
        $region48: #{tpu_custom_call.1} parent=43 // pred_fallthru
          _
      $region44: #{tpu_custom_call.1} parent=5 // pred_fallthru
        _
    $region6: #{tpu_custom_call.1} parent=1 // loop_footer
      %s19 = sadd.s32 1, %s15
    $region7: #{tpu_custom_call.1} parent=1 // loop_footer_branch
      %14 = sbr.rel target = $region3
    $region8: #{tpu_custom_call.1} parent=1 // loop_exit
      _
    %375 = vsyncpa [#allocation3], 1
    %s376 = scalar_lea.sflag [#allocation3], 1
    %377 = vsyncpa %s376, 1
    %378 = vsyncpa [#allocation4], 1
    %s379 = scalar_lea.sflag [#allocation4], 1
    %380 = vsyncpa %s379, 1

</llo_original>
